<compile_context>
chip_gen: v5e
topology: v5e:2x2
jax: 0.10.0
libtpu: 0.0.40
codegen_flags: <defaults>
</compile_context>

<pallas_src>
import functools

import jax
import jax.numpy as jnp
import numpy as np
from jax.experimental import pallas as pl
from jax.experimental.pallas import tpu as pltpu

_LANES = 128          # lane-dense width (multiple of 128 -> unmasked vst)
_MAX_ROW_TILE = 2048  # 2048 x 128 x f32 = 1 MiB per buffer; tiny vs VMEM


def _ipow(u, p):
    """u**p for a static Python int p >= 1 via squaring (min VPU multiplies)."""
    result = None
    base = u
    while p > 0:
        if p & 1:
            result = base if result is None else result * base
        p >>= 1
        if p:
            base = base * base
    return result


def _poly_cutoff_kernel(x_ref, o_ref, *, p, r_max, inv_r_max):
    """Elementwise polynomial cutoff on one [row_tile, 128] block."""
    x = x_ref[...].astype(jnp.float32)
    u = x * inv_r_max                       # x / r_max as a multiply

    pf = float(p)
    c0 = (pf + 1.0) * (pf + 2.0) / 2.0
    c1 = pf * (pf + 2.0)
    c2 = pf * (pf + 1.0) / 2.0

    u_p = _ipow(u, p)                       # power-by-squaring: pure VPU work
    # Horner-factored envelope: 1 - u^p * (c0 - u*(c1 - c2*u))
    env = 1.0 - u_p * (c0 - u * (c1 - c2 * u))
    env = jnp.where(x < r_max, env, 0.0)    # envelope *= (x < r_max).float()
    o_ref[...] = env.astype(o_ref.dtype)


@functools.partial(jax.jit, static_argnames=("r_max", "p"))
def polynomial_cutoff(x, *, r_max, p=6):
    """Pallas implementation of PolynomialCutoff.forward(x)."""
    assert p >= 1
    orig_shape = x.shape
    orig_dtype = x.dtype
    total = int(np.prod(orig_shape)) if orig_shape else 1

    # Sublane granularity for the row tile (packed dtypes need 16/32 rows).
    itemsize = int(jnp.dtype(orig_dtype).itemsize)
    sub = max(8, 32 // max(itemsize, 1))

    # Flatten; pad ONLY to the next multiple of 128 elements when ragged.
    xf = jnp.ravel(x)
    padded_total = pl.cdiv(total, _LANES) * _LANES
    padded = padded_total != total
    if padded:
        xf = jnp.pad(xf, (0, padded_total - total))
    rows = padded_total // _LANES
    x2 = xf.reshape(rows, _LANES)           # lane-dense slab (free reshape)

    # Tile selection: full-array block for tiny inputs, otherwise a sublane-
    # aligned tile that yields >= 2 grid steps (megacore split) capped at
    # _MAX_ROW_TILE.  The last grid block may be partial (Pallas clips OOB).
    if rows <= 2 * sub:
        row_tile = rows                     # block == full array dims (allowed)
    else:
        half = pl.cdiv(rows, 2)
        row_tile = min(_MAX_ROW_TILE, pl.cdiv(half, sub) * sub)
    grid = (pl.cdiv(rows, row_tile),)

    kernel = functools.partial(
        _poly_cutoff_kernel,
        p=int(p),
        r_max=float(r_max),
        inv_r_max=1.0 / float(r_max),
    )

    out2 = pl.pallas_call(
        kernel,
        out_shape=jax.ShapeDtypeStruct((rows, _LANES), orig_dtype),
        grid=grid,
        in_specs=[pl.BlockSpec((row_tile, _LANES), lambda i: (i, 0))],
        out_specs=pl.BlockSpec((row_tile, _LANES), lambda i: (i, 0)),
        # Reuse the padded temp's HBM allocation for the output when we made
        # one (it has no other consumers); never alias the caller's array.
        input_output_aliases=({0: 0} if padded else {}),
        compiler_params=pltpu.CompilerParams(
            dimension_semantics=("parallel",),   # v7x: 2 TCs split the grid
            vmem_limit_bytes=32 << 20,           # safe on v5e/v6e/v7x
        ),
    )(x2)

    if padded:
        # Only ragged sizes pay for this slice; the padded tail is discarded.
        return out2.reshape(-1)[:total].reshape(orig_shape)
    return out2.reshape(orig_shape)


def polynomial_cutoff_reference(x, *, r_max, p=6):
    """Pure-JAX faithful port of the PyTorch forward (for verification)."""
    pf = jnp.float32(p)
    r = jnp.float32(r_max)
    u = x / r
    env = (1.0
           - (pf + 1.0) * (pf + 2.0) / 2.0 * jnp.power(u, pf)
           + pf * (pf + 2.0) * jnp.power(u, pf + 1.0)
           - pf * (pf + 1.0) / 2.0 * jnp.power(u, pf + 2.0))
    return env * (x < r).astype(x.dtype)


if __name__ == "__main__":
    key = jax.random.PRNGKey(0)
    r_max = 5.0
    p = 6

    # Case 1: ragged edge count (exercises the minimal-pad + slice path).
    k1, k2 = jax.random.split(key)
    x_ragged = jax.random.uniform(k1, (1000,), dtype=jnp.float32,
                                  minval=0.0, maxval=1.25 * r_max)
    out_ragged = jax.block_until_ready(polynomial_cutoff(x_ragged, r_max=r_max, p=p))
    ref_ragged = polynomial_cutoff_reference(x_ragged, r_max=r_max, p=p)
    np.testing.assert_allclose(np.asarray(out_ragged), np.asarray(ref_ragged),
                               rtol=2e-5, atol=5e-5)

    # Case 2: multiple-of-128 edge count (no pad, no slice, >=2 grid tiles).
    x_even = jax.random.uniform(k2, (4096,), dtype=jnp.float32,
                                minval=0.0, maxval=1.25 * r_max)
    out_even = jax.block_until_ready(polynomial_cutoff(x_even, r_max=r_max, p=p))
    ref_even = polynomial_cutoff_reference(x_even, r_max=r_max, p=p)
    np.testing.assert_allclose(np.asarray(out_even), np.asarray(ref_even),
                               rtol=2e-5, atol=5e-5)

    print("KERNEL_OK")
</pallas_src>

<mosaic_0001>
module attributes {stable_mosaic.version = 11 : i64} {
  func.func @_poly_cutoff_kernel(%arg0: i32, %arg1: memref<8x128xf32, #tpu.memory_space<vmem>>, %arg2: memref<8x128xf32, #tpu.memory_space<vmem>>) attributes {dimension_semantics = [#tpu.dimension_semantics<parallel>], iteration_bounds = array<i64: 1>, scalar_prefetch = 0 : i64, scratch_operands = 0 : i64, tpu.core_type = #tpu.core_type<tc>, window_params = [{transform_indices = @transform_0, window_bounds = array<i64: 8, 128>}, {transform_indices = @transform_1, window_bounds = array<i64: 8, 128>}]} {
    %c0 = arith.constant 0 : index
    %c0_0 = arith.constant 0 : index
    %0 = vector.load %arg1[%c0, %c0_0] : memref<8x128xf32, #tpu.memory_space<vmem>>, vector<8x128xf32>
    %cst = arith.constant 2.000000e-01 : f32
    %1 = vector.broadcast %cst : f32 to vector<8x128xf32>
    %2 = arith.mulf %0, %1 : vector<8x128xf32>
    %3 = arith.mulf %2, %2 : vector<8x128xf32>
    %4 = arith.mulf %3, %3 : vector<8x128xf32>
    %5 = arith.mulf %3, %4 : vector<8x128xf32>
    %cst_1 = arith.constant 2.100000e+01 : f32
    %6 = vector.broadcast %cst_1 : f32 to vector<8x128xf32>
    %7 = arith.mulf %6, %2 : vector<8x128xf32>
    %cst_2 = arith.constant 4.800000e+01 : f32
    %8 = vector.broadcast %cst_2 : f32 to vector<8x128xf32>
    %9 = arith.subf %8, %7 : vector<8x128xf32>
    %10 = arith.mulf %2, %9 : vector<8x128xf32>
    %cst_3 = arith.constant 2.800000e+01 : f32
    %11 = vector.broadcast %cst_3 : f32 to vector<8x128xf32>
    %12 = arith.subf %11, %10 : vector<8x128xf32>
    %13 = arith.mulf %5, %12 : vector<8x128xf32>
    %cst_4 = arith.constant 1.000000e+00 : f32
    %14 = vector.broadcast %cst_4 : f32 to vector<8x128xf32>
    %15 = arith.subf %14, %13 : vector<8x128xf32>
    %cst_5 = arith.constant 5.000000e+00 : f32
    %16 = vector.broadcast %cst_5 : f32 to vector<8x128xf32>
    %17 = arith.cmpf olt, %0, %16 : vector<8x128xf32>
    %cst_6 = arith.constant 0.000000e+00 : f32
    %18 = vector.broadcast %cst_6 : f32 to vector<8x128xf32>
    %19 = arith.select %17, %15, %18 : vector<8x128xi1>, vector<8x128xf32>
    %c0_7 = arith.constant 0 : index
    %c0_8 = arith.constant 0 : index
    %20 = vector.load %arg2[%c0_7, %c0_8] : memref<8x128xf32, #tpu.memory_space<vmem>>, vector<8x128xf32>
    tpu.vector_store %arg2[%c0_7, %c0_8], %19 {strides = array<i32>} : memref<8x128xf32, #tpu.memory_space<vmem>>, vector<8x128xf32>,
    return
  }
  func.func @transform_0(%arg0: i32) -> (i32, i32) {
    %c0_i32 = arith.constant 0 : i32
    %c0_i32_0 = arith.constant 0 : i32
    return %arg0, %c0_i32 : i32, i32
  }
  func.func @transform_1(%arg0: i32) -> (i32, i32) {
    %c0_i32 = arith.constant 0 : i32
    %c0_i32_0 = arith.constant 0 : i32
    return %arg0, %c0_i32 : i32, i32
  }
}

</mosaic_0001>

<llo_original>
// kernel: polynomial_cutoff.1
$region0: #{polynomial_cutoff.1}
  #allocation0 [shape = 'u32[]', space=smem, size = 0x4, offset = 0x4, fixed_abs, tag = 'smem constant byte address 0x4 - core index']
  #allocation1 [shape = 'u32[72,128]{1,0:T(1,128)}', space=vmem, size = 0x9000, scoped, tag = 'internal scratch']
  %s0 = inlined_call_operand.vmem [shape: f32[8,128], index: 0, kind: input, shape index: {}, may-alias: {0,1}]
  %s1 = inlined_call_operand.vmem [shape: f32[8,128], index: 1, kind: output, shape index: {}, may-alias: {0,1}]
  %s2 = sld [smem:[#allocation0]]
  $region14: #{polynomial_cutoff.1} parent=0
    _
  %s4 = ssub.s32 1, %s2
  %s5 = scalar_select 0, %s4, %s2
  // Predicated region
  $region2: #{polynomial_cutoff.1} parent=0 // pred_check
    _
  $region3: #{polynomial_cutoff.1} parent=0 // pred_check_branch
    %7 = sbr.rel (0) target = $region5
  $region4: #{polynomial_cutoff.1} parent=0 // pred_region
    _
  $region5: #{polynomial_cutoff.1} parent=0 // pred_fallthru
    _
  %v8 = vld [vmem:[%s0] sm:$0xff]
  %v9 = vmul.f32 %v8, 0.2
  %v10 = vmul.f32 %v9, %v9
  %v11 = vmul.f32 %v10, %v10
  %v12 = vmul.f32 %v10, %v11
  %v13 = vmul.f32 %v9, 21.0
  %v14 = vsub.f32 48.0, %v13
  %v15 = vmul.f32 %v9, %v14
  %v16 = vsub.f32 28.0, %v15
  %v17 = vmul.f32 %v12, %v16
  %v18 = vsub.f32 1.0, %v17
  %vm19 = vcmp.lt.f32.partialorder %v8, 5.0
  %v20 = vsel %vm19, %v18, 0.0
  %21 = vst [vmem:[%s1] sm:$0xff] %v20
  // Predicated region
  $region6: #{polynomial_cutoff.1} parent=0 // pred_check
    _
  $region7: #{polynomial_cutoff.1} parent=0 // pred_check_branch
    %23 = sbr.rel (0) target = $region9
  $region8: #{polynomial_cutoff.1} parent=0 // pred_region
    _
  $region9: #{polynomial_cutoff.1} parent=0 // pred_fallthru
    _
  // Predicated region
  $region10: #{polynomial_cutoff.1} parent=0 // pred_check
    _
  $region11: #{polynomial_cutoff.1} parent=0 // pred_check_branch
    %25 = sbr.rel (0) target = $region13
  $region12: #{polynomial_cutoff.1} parent=0 // pred_region
    _
  $region13: #{polynomial_cutoff.1} parent=0 // pred_fallthru
    _

</llo_original>
